<compile_context>
chip_gen: v6e
topology: v6e:2x2x1
jax: 0.10.0
libtpu: 0.0.40
codegen_flags: <defaults>
</compile_context>

<pallas_src>
import functools

import jax
import jax.numpy as jnp
from jax import lax
from jax.experimental import pallas as pl
from jax.experimental.pallas import tpu as pltpu


def _elu(x):
    # ELU with alpha=1 (nn.ELU default)
    return jnp.where(x > 0, x, jnp.exp(jnp.minimum(x, 0.0)) - 1.0)


def rmblock_kernel(H, W,
                   x_ref, w_sq_ref, sq_s_ref, sq_b_ref,
                   w_dw_ref, dw_s_ref, dw_b_ref,
                   w_ex_ref, ex_s_ref, ex_b_ref, out_ref):
    """One grid step == one image, as a (C, H*W) channels-on-sublanes tile."""
    HW = H * W
    x = x_ref[0]                                    # (Cin, HW) f32

    # ---- squeeze 1x1 conv (MXU) + BN + ELU --------------------------------
    y = jnp.dot(w_sq_ref[...], x.astype(w_sq_ref.dtype),
                preferred_element_type=jnp.float32)          # (Cs, HW) f32
    y = _elu(y * sq_s_ref[...] + sq_b_ref[...])              # lane-dense VPU/EUP

    # ---- depthwise 3x3, stride 1, pad 1, + BN + ELU -----------------------
    # Tap (dh, dw) of pixel l = h*W + w reads pixel l + dh*W + dw -> a lane
    # roll of the (Cs, HW) activation (XLU slot) plus a boundary mask.
    lane = lax.broadcasted_iota(jnp.int32, (y.shape[0], HW), 1)
    if W & (W - 1) == 0:                            # power-of-two fast path
        col = lane & (W - 1)
        row = lane >> (W.bit_length() - 1)
    else:
        col = lane % W
        row = lane // W

    wdw = w_dw_ref[...]                             # (Cs, 9) f32, read once
    acc = y * wdw[:, 4:5]                           # center tap (kh=1, kw=1)
    for kh in range(3):
        for kw in range(3):
            if kh == 1 and kw == 1:
                continue
            dh, dw = kh - 1, kw - 1
            off = dh * W + dw
            tap = pltpu.roll(y, shift=(-off) % HW, axis=1)
            valid = None
            if dh == -1:
                valid = row >= 1
            elif dh == 1:
                valid = row < H - 1
            if dw == -1:
                c = col >= 1
                valid = c if valid is None else jnp.logical_and(valid, c)
            elif dw == 1:
                c = col < W - 1
                valid = c if valid is None else jnp.logical_and(valid, c)
            tap = jnp.where(valid, tap, 0.0)
            acc = acc + tap * wdw[:, kh * 3 + kw:kh * 3 + kw + 1]
    z = _elu(acc * dw_s_ref[...] + dw_b_ref[...])   # (Cs, HW) f32

    # ---- expand 1x1 conv (MXU) + BN ---------------------------------------
    o = jnp.dot(w_ex_ref[...], z.astype(w_ex_ref.dtype),
                preferred_element_type=jnp.float32)          # (Cout, HW) f32
    o = o * ex_s_ref[...] + ex_b_ref[...]

    # dropout: inference mode -> identity
    # ---- residual add (downsample=False: residual = x) + ELU --------------
    out_ref[0] = _elu(o + x).astype(out_ref.dtype)           # lane-dense store


def rmblock_forward(x_nchw, params, *, matmul_dtype=jnp.bfloat16):
    """x_nchw: (N, Cin, H, W) float32; returns (N, Cout, H, W) float32.

    NCHW is the kernel-native layout (channels -> sublanes, pixels -> lanes),
    so there are no boundary transposes -- only free contiguous reshapes.
    """
    (w_sq, sq_s, sq_b, w_dw, dw_s, dw_b, w_ex, ex_s, ex_b) = params
    N, Cin, H, W = x_nchw.shape
    Cs = w_sq.shape[0]
    Cout = w_ex.shape[0]
    assert Cin == Cout, "downsample=False residual add requires Cin == Cout"
    HW = H * W

    x_flat = x_nchw.reshape(N, Cin, HW).astype(jnp.float32)   # free reshape

    col = lambda v: v.reshape(-1, 1).astype(jnp.float32)      # (C,) -> (C, 1)
    w_sq_k = w_sq.astype(matmul_dtype)                        # (Cs, Cin)
    w_ex_k = w_ex.astype(matmul_dtype)                        # (Cout, Cs)
    w_dw_k = w_dw.reshape(Cs, 9).astype(jnp.float32)          # (Cs,3,3)->(Cs,9)

    flops = N * HW * (2 * Cin * Cs + 2 * 9 * Cs + 2 * Cs * Cout
                      + 8 * Cs + 6 * Cout)
    transcendentals = N * HW * (2 * Cs + Cout)                # one exp per ELU elem
    bytes_accessed = (4 * N * HW * (Cin + Cout)
                      + w_sq_k.size * w_sq_k.dtype.itemsize
                      + w_ex_k.size * w_ex_k.dtype.itemsize
                      + 4 * (9 * Cs + 4 * Cs + 2 * Cout))

    kernel = functools.partial(rmblock_kernel, H, W)
    out_flat = pl.pallas_call(
        kernel,
        out_shape=jax.ShapeDtypeStruct((N, Cout, HW), jnp.float32),
        grid_spec=pltpu.PrefetchScalarGridSpec(
            num_scalar_prefetch=0,
            grid=(N,),
            in_specs=[
                pl.BlockSpec((1, Cin, HW), lambda n: (n, 0, 0)),   # x (per image)
                pl.BlockSpec((Cs, Cin), lambda n: (0, 0)),         # squeeze weight
                pl.BlockSpec((Cs, 1), lambda n: (0, 0)),           # squeeze BN scale
                pl.BlockSpec((Cs, 1), lambda n: (0, 0)),           # squeeze BN bias
                pl.BlockSpec((Cs, 9), lambda n: (0, 0)),           # dw weights (taps)
                pl.BlockSpec((Cs, 1), lambda n: (0, 0)),           # dw BN scale
                pl.BlockSpec((Cs, 1), lambda n: (0, 0)),           # dw BN bias
                pl.BlockSpec((Cout, Cs), lambda n: (0, 0)),        # expand weight
                pl.BlockSpec((Cout, 1), lambda n: (0, 0)),         # expand BN scale
                pl.BlockSpec((Cout, 1), lambda n: (0, 0)),         # expand BN bias
            ],
            out_specs=pl.BlockSpec((1, Cout, HW), lambda n: (n, 0, 0)),
        ),
        compiler_params=pltpu.CompilerParams(
            dimension_semantics=("parallel",)),   # megacore split over batch (v7x)
        cost_estimate=pl.CostEstimate(
            flops=int(flops), transcendentals=int(transcendentals),
            bytes_accessed=int(bytes_accessed)),
    )(x_flat, w_sq_k, col(sq_s), col(sq_b),
      w_dw_k, col(dw_s), col(dw_b),
      w_ex_k, col(ex_s), col(ex_b))

    return out_flat.reshape(N, Cout, H, W)        # free reshape back to NCHW


def make_params(key, cin, cs, cout):
    """Deterministic init mirroring RMBlock.__init__ (kaiming fan_out; eval-mode
    BatchNorm folded into per-channel scale/bias with fresh running stats)."""
    k1, k2, k3 = jax.random.split(key, 3)
    # kaiming_normal_(mode='fan_out'): std = sqrt(2 / fan_out)
    w_sq = jax.random.normal(k1, (cs, cin), jnp.float32) * jnp.sqrt(2.0 / cs)
    w_dw = jax.random.normal(k2, (cs, 3, 3), jnp.float32) * jnp.sqrt(2.0 / (cs * 9))
    w_ex = jax.random.normal(k3, (cout, cs), jnp.float32) * jnp.sqrt(2.0 / cout)

    # BatchNorm (eval): gamma=1, beta=0, running_mean=0, running_var=1, eps=1e-5
    eps = 1e-5

    def bn_fold(c):
        scale = jnp.full((c,), 1.0 / jnp.sqrt(1.0 + eps), jnp.float32)
        bias = jnp.zeros((c,), jnp.float32)
        return scale, bias

    sq_s, sq_b = bn_fold(cs)
    dw_s, dw_b = bn_fold(cs)
    ex_s, ex_b = bn_fold(cout)
    return (w_sq, sq_s, sq_b, w_dw, dw_s, dw_b, w_ex, ex_s, ex_b)


def rmblock_reference(x_nchw, params, *, matmul_dtype=jnp.bfloat16):
    """Pure-JAX reference (lax.conv, NCHW) using the kernel's precision policy
    (bf16 1x1-conv inputs, f32 accumulation and element-wise math)."""
    (w_sq, sq_s, sq_b, w_dw, dw_s, dw_b, w_ex, ex_s, ex_b) = params
    dn = ('NCHW', 'OIHW', 'NCHW')
    cs = w_sq.shape[0]

    def bn(t, s, b):
        return t * s.reshape(1, -1, 1, 1) + b.reshape(1, -1, 1, 1)

    y = lax.conv_general_dilated(
        x_nchw.astype(matmul_dtype), w_sq[:, :, None, None].astype(matmul_dtype),
        (1, 1), 'VALID', dimension_numbers=dn,
        preferred_element_type=jnp.float32)
    y = _elu(bn(y, sq_s, sq_b))

    z = lax.conv_general_dilated(
        y, w_dw[:, None, :, :], (1, 1), ((1, 1), (1, 1)),
        dimension_numbers=dn, feature_group_count=cs)
    z = _elu(bn(z, dw_s, dw_b))

    o = lax.conv_general_dilated(
        z.astype(matmul_dtype), w_ex[:, :, None, None].astype(matmul_dtype),
        (1, 1), 'VALID', dimension_numbers=dn,
        preferred_element_type=jnp.float32)
    o = bn(o, ex_s, ex_b)
    return _elu(o + x_nchw)


if __name__ == "__main__":
    N, Cin, H, W = 2, 32, 16, 16
    Cs, Cout = 16, 32               # input_planes == output_planes (downsample=False)

    key = jax.random.PRNGKey(0)
    kx, kp = jax.random.split(key)
    x = jax.random.normal(kx, (N, Cin, H, W), jnp.float32)   # NCHW, PyTorch convention
    params = make_params(kp, Cin, Cs, Cout)

    out = jax.block_until_ready(rmblock_forward(x, params))
    assert out.shape == (N, Cout, H, W), out.shape

    ref = jax.block_until_ready(rmblock_reference(x, params))
    max_err = float(jnp.max(jnp.abs(out - ref)))
    assert jnp.allclose(out, ref, rtol=1e-2, atol=1e-2), max_err

    print("KERNEL_OK")
</pallas_src>

<mosaic_0001>
module attributes {stable_mosaic.version = 11 : i64} {
  func.func @rmblock_kernel(%arg0: i32, %arg1: memref<1x32x256xf32, #tpu.memory_space<vmem>>, %arg2: memref<16x32xbf16, #tpu.memory_space<vmem>>, %arg3: memref<16x1xf32, #tpu.memory_space<vmem>>, %arg4: memref<16x1xf32, #tpu.memory_space<vmem>>, %arg5: memref<16x9xf32, #tpu.memory_space<vmem>>, %arg6: memref<16x1xf32, #tpu.memory_space<vmem>>, %arg7: memref<16x1xf32, #tpu.memory_space<vmem>>, %arg8: memref<32x16xbf16, #tpu.memory_space<vmem>>, %arg9: memref<32x1xf32, #tpu.memory_space<vmem>>, %arg10: memref<32x1xf32, #tpu.memory_space<vmem>>, %arg11: memref<1x32x256xf32, #tpu.memory_space<vmem>>) attributes {dimension_semantics = [#tpu.dimension_semantics<parallel>], iteration_bounds = array<i64: 2>, scalar_prefetch = 0 : i64, scratch_operands = 0 : i64, tpu.core_type = #tpu.core_type<tc>, window_params = [{transform_indices = @transform_0, window_bounds = array<i64: 1, 32, 256>}, {pipeline_mode = #tpu.pipeline_mode<synchronous>, transform_indices = @transform_1, window_bounds = array<i64: 16, 32>}, {pipeline_mode = #tpu.pipeline_mode<synchronous>, transform_indices = @transform_2, window_bounds = array<i64: 16, 1>}, {pipeline_mode = #tpu.pipeline_mode<synchronous>, transform_indices = @transform_3, window_bounds = array<i64: 16, 1>}, {pipeline_mode = #tpu.pipeline_mode<synchronous>, transform_indices = @transform_4, window_bounds = array<i64: 16, 9>}, {pipeline_mode = #tpu.pipeline_mode<synchronous>, transform_indices = @transform_5, window_bounds = array<i64: 16, 1>}, {pipeline_mode = #tpu.pipeline_mode<synchronous>, transform_indices = @transform_6, window_bounds = array<i64: 16, 1>}, {pipeline_mode = #tpu.pipeline_mode<synchronous>, transform_indices = @transform_7, window_bounds = array<i64: 32, 16>}, {pipeline_mode = #tpu.pipeline_mode<synchronous>, transform_indices = @transform_8, window_bounds = array<i64: 32, 1>}, {pipeline_mode = #tpu.pipeline_mode<synchronous>, transform_indices = @transform_9, window_bounds = array<i64: 32, 1>}, {transform_indices = @transform_10, window_bounds = array<i64: 1, 32, 256>}]} {
    %c0 = arith.constant 0 : index
    %c0_0 = arith.constant 0 : index
    %c0_1 = arith.constant 0 : index
    %0 = vector.load %arg1[%c0, %c0_0, %c0_1] : memref<1x32x256xf32, #tpu.memory_space<vmem>>, vector<1x32x256xf32>
    %1 = vector.shape_cast %0 : vector<1x32x256xf32> to vector<32x256xf32>
    %c0_2 = arith.constant 0 : index
    %c0_3 = arith.constant 0 : index
    %2 = vector.load %arg2[%c0_2, %c0_3] : memref<16x32xbf16, #tpu.memory_space<vmem>>, vector<16x32xbf16>
    %3 = arith.truncf %1 : vector<32x256xf32> to vector<32x256xbf16>
    %cst = arith.constant dense<0.000000e+00> : vector<16x256xf32>
    %4 = tpu.matmul %2, %3, %cst {dimension_numbers = #tpu.dot_dimension_numbers<[1], [0], [0], [1], [0, 0, 1, 1], [], []>} : vector<16x32xbf16>, vector<32x256xbf16>, vector<16x256xf32> -> vector<16x256xf32>
    %c0_4 = arith.constant 0 : index
    %c0_5 = arith.constant 0 : index
    %5 = vector.load %arg3[%c0_4, %c0_5] : memref<16x1xf32, #tpu.memory_space<vmem>>, vector<16x1xf32>
    %6 = vector.broadcast %5 : vector<16x1xf32> to vector<16x256xf32>
    %7 = arith.mulf %4, %6 : vector<16x256xf32>
    %c0_6 = arith.constant 0 : index
    %c0_7 = arith.constant 0 : index
    %8 = vector.load %arg4[%c0_6, %c0_7] : memref<16x1xf32, #tpu.memory_space<vmem>>, vector<16x1xf32>
    %9 = vector.broadcast %8 : vector<16x1xf32> to vector<16x256xf32>
    %10 = arith.addf %7, %9 : vector<16x256xf32>
    %cst_8 = arith.constant 0.000000e+00 : f32
    %11 = vector.broadcast %cst_8 : f32 to vector<16x256xf32>
    %12 = arith.cmpf ogt, %10, %11 : vector<16x256xf32>
    %cst_9 = arith.constant 0.000000e+00 : f32
    %13 = vector.broadcast %cst_9 : f32 to vector<16x256xf32>
    %14 = arith.minimumf %10, %13 : vector<16x256xf32>
    %15 = math.exp %14 : vector<16x256xf32>
    %cst_10 = arith.constant 1.000000e+00 : f32
    %16 = vector.broadcast %cst_10 : f32 to vector<16x256xf32>
    %17 = arith.subf %15, %16 : vector<16x256xf32>
    %18 = arith.select %12, %10, %17 : vector<16x256xi1>, vector<16x256xf32>
    %19 = tpu.iota {dimensions = array<i32: 1>} : vector<16x256xi32>
    %c15_i32 = arith.constant 15 : i32
    %20 = vector.broadcast %c15_i32 : i32 to vector<16x256xi32>
    %21 = arith.andi %19, %20 : vector<16x256xi32>
    %c4_i32 = arith.constant 4 : i32
    %22 = vector.broadcast %c4_i32 : i32 to vector<16x256xi32>
    %23 = arith.shrsi %19, %22 : vector<16x256xi32>
    %c0_11 = arith.constant 0 : index
    %c0_12 = arith.constant 0 : index
    %24 = vector.load %arg5[%c0_11, %c0_12] : memref<16x9xf32, #tpu.memory_space<vmem>>, vector<16x9xf32>
    %25 = vector.extract_strided_slice %24 {offsets = [0, 4], sizes = [16, 1], strides = [1, 1]} : vector<16x9xf32> to vector<16x1xf32>
    %26 = vector.broadcast %25 : vector<16x1xf32> to vector<16x256xf32>
    %27 = arith.mulf %18, %26 : vector<16x256xf32>
    %c17_i32 = arith.constant 17 : i32
    %28 = tpu.dynamic_rotate %18 by %c17_i32 dim 1 : vector<16x256xf32>, i32 -> vector<16x256xf32>
    %c1_i32 = arith.constant 1 : i32
    %29 = vector.broadcast %c1_i32 : i32 to vector<16x256xi32>
    %30 = arith.cmpi sge, %23, %29 : vector<16x256xi32>
    %c1_i32_13 = arith.constant 1 : i32
    %31 = vector.broadcast %c1_i32_13 : i32 to vector<16x256xi32>
    %32 = arith.cmpi sge, %21, %31 : vector<16x256xi32>
    %33 = arith.andi %30, %32 : vector<16x256xi1>
    %cst_14 = arith.constant 0.000000e+00 : f32
    %34 = vector.broadcast %cst_14 : f32 to vector<16x256xf32>
    %35 = arith.select %33, %28, %34 : vector<16x256xi1>, vector<16x256xf32>
    %36 = vector.extract_strided_slice %24 {offsets = [0, 0], sizes = [16, 1], strides = [1, 1]} : vector<16x9xf32> to vector<16x1xf32>
    %37 = vector.broadcast %36 : vector<16x1xf32> to vector<16x256xf32>
    %38 = arith.mulf %35, %37 : vector<16x256xf32>
    %39 = arith.addf %27, %38 : vector<16x256xf32>
    %c16_i32 = arith.constant 16 : i32
    %40 = tpu.dynamic_rotate %18 by %c16_i32 dim 1 : vector<16x256xf32>, i32 -> vector<16x256xf32>
    %c1_i32_15 = arith.constant 1 : i32
    %41 = vector.broadcast %c1_i32_15 : i32 to vector<16x256xi32>
    %42 = arith.cmpi sge, %23, %41 : vector<16x256xi32>
    %cst_16 = arith.constant 0.000000e+00 : f32
    %43 = vector.broadcast %cst_16 : f32 to vector<16x256xf32>
    %44 = arith.select %42, %40, %43 : vector<16x256xi1>, vector<16x256xf32>
    %45 = vector.extract_strided_slice %24 {offsets = [0, 1], sizes = [16, 1], strides = [1, 1]} : vector<16x9xf32> to vector<16x1xf32>
    %46 = vector.broadcast %45 : vector<16x1xf32> to vector<16x256xf32>
    %47 = arith.mulf %44, %46 : vector<16x256xf32>
    %48 = arith.addf %39, %47 : vector<16x256xf32>
    %c15_i32_17 = arith.constant 15 : i32
    %49 = tpu.dynamic_rotate %18 by %c15_i32_17 dim 1 : vector<16x256xf32>, i32 -> vector<16x256xf32>
    %c1_i32_18 = arith.constant 1 : i32
    %50 = vector.broadcast %c1_i32_18 : i32 to vector<16x256xi32>
    %51 = arith.cmpi sge, %23, %50 : vector<16x256xi32>
    %c15_i32_19 = arith.constant 15 : i32
    %52 = vector.broadcast %c15_i32_19 : i32 to vector<16x256xi32>
    %53 = arith.cmpi slt, %21, %52 : vector<16x256xi32>
    %54 = arith.andi %51, %53 : vector<16x256xi1>
    %cst_20 = arith.constant 0.000000e+00 : f32
    %55 = vector.broadcast %cst_20 : f32 to vector<16x256xf32>
    %56 = arith.select %54, %49, %55 : vector<16x256xi1>, vector<16x256xf32>
    %57 = vector.extract_strided_slice %24 {offsets = [0, 2], sizes = [16, 1], strides = [1, 1]} : vector<16x9xf32> to vector<16x1xf32>
    %58 = vector.broadcast %57 : vector<16x1xf32> to vector<16x256xf32>
    %59 = arith.mulf %56, %58 : vector<16x256xf32>
    %60 = arith.addf %48, %59 : vector<16x256xf32>
    %c1_i32_21 = arith.constant 1 : i32
    %61 = tpu.dynamic_rotate %18 by %c1_i32_21 dim 1 : vector<16x256xf32>, i32 -> vector<16x256xf32>
    %c1_i32_22 = arith.constant 1 : i32
    %62 = vector.broadcast %c1_i32_22 : i32 to vector<16x256xi32>
    %63 = arith.cmpi sge, %21, %62 : vector<16x256xi32>
    %cst_23 = arith.constant 0.000000e+00 : f32
    %64 = vector.broadcast %cst_23 : f32 to vector<16x256xf32>
    %65 = arith.select %63, %61, %64 : vector<16x256xi1>, vector<16x256xf32>
    %66 = vector.extract_strided_slice %24 {offsets = [0, 3], sizes = [16, 1], strides = [1, 1]} : vector<16x9xf32> to vector<16x1xf32>
    %67 = vector.broadcast %66 : vector<16x1xf32> to vector<16x256xf32>
    %68 = arith.mulf %65, %67 : vector<16x256xf32>
    %69 = arith.addf %60, %68 : vector<16x256xf32>
    %c255_i32 = arith.constant 255 : i32
    %70 = tpu.dynamic_rotate %18 by %c255_i32 dim 1 : vector<16x256xf32>, i32 -> vector<16x256xf32>
    %c15_i32_24 = arith.constant 15 : i32
    %71 = vector.broadcast %c15_i32_24 : i32 to vector<16x256xi32>
    %72 = arith.cmpi slt, %21, %71 : vector<16x256xi32>
    %cst_25 = arith.constant 0.000000e+00 : f32
    %73 = vector.broadcast %cst_25 : f32 to vector<16x256xf32>
    %74 = arith.select %72, %70, %73 : vector<16x256xi1>, vector<16x256xf32>
    %75 = vector.extract_strided_slice %24 {offsets = [0, 5], sizes = [16, 1], strides = [1, 1]} : vector<16x9xf32> to vector<16x1xf32>
    %76 = vector.broadcast %75 : vector<16x1xf32> to vector<16x256xf32>
    %77 = arith.mulf %74, %76 : vector<16x256xf32>
    %78 = arith.addf %69, %77 : vector<16x256xf32>
    %c241_i32 = arith.constant 241 : i32
    %79 = tpu.dynamic_rotate %18 by %c241_i32 dim 1 : vector<16x256xf32>, i32 -> vector<16x256xf32>
    %c15_i32_26 = arith.constant 15 : i32
    %80 = vector.broadcast %c15_i32_26 : i32 to vector<16x256xi32>
    %81 = arith.cmpi slt, %23, %80 : vector<16x256xi32>
    %c1_i32_27 = arith.constant 1 : i32
    %82 = vector.broadcast %c1_i32_27 : i32 to vector<16x256xi32>
    %83 = arith.cmpi sge, %21, %82 : vector<16x256xi32>
    %84 = arith.andi %81, %83 : vector<16x256xi1>
    %cst_28 = arith.constant 0.000000e+00 : f32
    %85 = vector.broadcast %cst_28 : f32 to vector<16x256xf32>
    %86 = arith.select %84, %79, %85 : vector<16x256xi1>, vector<16x256xf32>
    %87 = vector.extract_strided_slice %24 {offsets = [0, 6], sizes = [16, 1], strides = [1, 1]} : vector<16x9xf32> to vector<16x1xf32>
    %88 = vector.broadcast %87 : vector<16x1xf32> to vector<16x256xf32>
    %89 = arith.mulf %86, %88 : vector<16x256xf32>
    %90 = arith.addf %78, %89 : vector<16x256xf32>
    %c240_i32 = arith.constant 240 : i32
    %91 = tpu.dynamic_rotate %18 by %c240_i32 dim 1 : vector<16x256xf32>, i32 -> vector<16x256xf32>
    %c15_i32_29 = arith.constant 15 : i32
    %92 = vector.broadcast %c15_i32_29 : i32 to vector<16x256xi32>
    %93 = arith.cmpi slt, %23, %92 : vector<16x256xi32>
    %cst_30 = arith.constant 0.000000e+00 : f32
    %94 = vector.broadcast %cst_30 : f32 to vector<16x256xf32>
    %95 = arith.select %93, %91, %94 : vector<16x256xi1>, vector<16x256xf32>
    %96 = vector.extract_strided_slice %24 {offsets = [0, 7], sizes = [16, 1], strides = [1, 1]} : vector<16x9xf32> to vector<16x1xf32>
    %97 = vector.broadcast %96 : vector<16x1xf32> to vector<16x256xf32>
    %98 = arith.mulf %95, %97 : vector<16x256xf32>
    %99 = arith.addf %90, %98 : vector<16x256xf32>
    %c239_i32 = arith.constant 239 : i32
    %100 = tpu.dynamic_rotate %18 by %c239_i32 dim 1 : vector<16x256xf32>, i32 -> vector<16x256xf32>
    %c15_i32_31 = arith.constant 15 : i32
    %101 = vector.broadcast %c15_i32_31 : i32 to vector<16x256xi32>
    %102 = arith.cmpi slt, %23, %101 : vector<16x256xi32>
    %c15_i32_32 = arith.constant 15 : i32
    %103 = vector.broadcast %c15_i32_32 : i32 to vector<16x256xi32>
    %104 = arith.cmpi slt, %21, %103 : vector<16x256xi32>
    %105 = arith.andi %102, %104 : vector<16x256xi1>
    %cst_33 = arith.constant 0.000000e+00 : f32
    %106 = vector.broadcast %cst_33 : f32 to vector<16x256xf32>
    %107 = arith.select %105, %100, %106 : vector<16x256xi1>, vector<16x256xf32>
    %108 = vector.extract_strided_slice %24 {offsets = [0, 8], sizes = [16, 1], strides = [1, 1]} : vector<16x9xf32> to vector<16x1xf32>
    %109 = vector.broadcast %108 : vector<16x1xf32> to vector<16x256xf32>
    %110 = arith.mulf %107, %109 : vector<16x256xf32>
    %111 = arith.addf %99, %110 : vector<16x256xf32>
    %c0_34 = arith.constant 0 : index
    %c0_35 = arith.constant 0 : index
    %112 = vector.load %arg6[%c0_34, %c0_35] : memref<16x1xf32, #tpu.memory_space<vmem>>, vector<16x1xf32>
    %113 = vector.broadcast %112 : vector<16x1xf32> to vector<16x256xf32>
    %114 = arith.mulf %111, %113 : vector<16x256xf32>
    %c0_36 = arith.constant 0 : index
    %c0_37 = arith.constant 0 : index
    %115 = vector.load %arg7[%c0_36, %c0_37] : memref<16x1xf32, #tpu.memory_space<vmem>>, vector<16x1xf32>
    %116 = vector.broadcast %115 : vector<16x1xf32> to vector<16x256xf32>
    %117 = arith.addf %114, %116 : vector<16x256xf32>
    %cst_38 = arith.constant 0.000000e+00 : f32
    %118 = vector.broadcast %cst_38 : f32 to vector<16x256xf32>
    %119 = arith.cmpf ogt, %117, %118 : vector<16x256xf32>
    %cst_39 = arith.constant 0.000000e+00 : f32
    %120 = vector.broadcast %cst_39 : f32 to vector<16x256xf32>
    %121 = arith.minimumf %117, %120 : vector<16x256xf32>
    %122 = math.exp %121 : vector<16x256xf32>
    %cst_40 = arith.constant 1.000000e+00 : f32
    %123 = vector.broadcast %cst_40 : f32 to vector<16x256xf32>
    %124 = arith.subf %122, %123 : vector<16x256xf32>
    %125 = arith.select %119, %117, %124 : vector<16x256xi1>, vector<16x256xf32>
    %c0_41 = arith.constant 0 : index
    %c0_42 = arith.constant 0 : index
    %126 = vector.load %arg8[%c0_41, %c0_42] : memref<32x16xbf16, #tpu.memory_space<vmem>>, vector<32x16xbf16>
    %127 = arith.truncf %125 : vector<16x256xf32> to vector<16x256xbf16>
    %cst_43 = arith.constant dense<0.000000e+00> : vector<32x256xf32>
    %128 = tpu.matmul %126, %127, %cst_43 {dimension_numbers = #tpu.dot_dimension_numbers<[1], [0], [0], [1], [0, 0, 1, 1], [], []>} : vector<32x16xbf16>, vector<16x256xbf16>, vector<32x256xf32> -> vector<32x256xf32>
    %c0_44 = arith.constant 0 : index
    %c0_45 = arith.constant 0 : index
    %129 = vector.load %arg9[%c0_44, %c0_45] : memref<32x1xf32, #tpu.memory_space<vmem>>, vector<32x1xf32>
    %130 = vector.broadcast %129 : vector<32x1xf32> to vector<32x256xf32>
    %131 = arith.mulf %128, %130 : vector<32x256xf32>
    %c0_46 = arith.constant 0 : index
    %c0_47 = arith.constant 0 : index
    %132 = vector.load %arg10[%c0_46, %c0_47] : memref<32x1xf32, #tpu.memory_space<vmem>>, vector<32x1xf32>
    %133 = vector.broadcast %132 : vector<32x1xf32> to vector<32x256xf32>
    %134 = arith.addf %131, %133 : vector<32x256xf32>
    %135 = arith.addf %134, %1 : vector<32x256xf32>
    %cst_48 = arith.constant 0.000000e+00 : f32
    %136 = vector.broadcast %cst_48 : f32 to vector<32x256xf32>
    %137 = arith.cmpf ogt, %135, %136 : vector<32x256xf32>
    %cst_49 = arith.constant 0.000000e+00 : f32
    %138 = vector.broadcast %cst_49 : f32 to vector<32x256xf32>
    %139 = arith.minimumf %135, %138 : vector<32x256xf32>
    %140 = math.exp %139 : vector<32x256xf32>
    %cst_50 = arith.constant 1.000000e+00 : f32
    %141 = vector.broadcast %cst_50 : f32 to vector<32x256xf32>
    %142 = arith.subf %140, %141 : vector<32x256xf32>
    %143 = arith.select %137, %135, %142 : vector<32x256xi1>, vector<32x256xf32>
    %c0_51 = arith.constant 0 : index
    %c0_52 = arith.constant 0 : index
    %c0_53 = arith.constant 0 : index
    %144 = vector.load %arg11[%c0_51, %c0_52, %c0_53] : memref<1x32x256xf32, #tpu.memory_space<vmem>>, vector<1x32x256xf32>
    %145 = vector.shape_cast %144 : vector<1x32x256xf32> to vector<32x256xf32>
    %146 = vector.shape_cast %143 : vector<32x256xf32> to vector<1x32x256xf32>
    tpu.vector_store %arg11[%c0_51, %c0_52, %c0_53], %146 {strides = array<i32>} : memref<1x32x256xf32, #tpu.memory_space<vmem>>, vector<1x32x256xf32>,
    return
  }
  func.func @transform_0(%arg0: i32) -> (i32, i32, i32) {
    %c0_i32 = arith.constant 0 : i32
    %c0_i32_0 = arith.constant 0 : i32
    %c0_i32_1 = arith.constant 0 : i32
    return %arg0, %c0_i32, %c0_i32_0 : i32, i32, i32
  }
  func.func @transform_1(%arg0: i32) -> (i32, i32) {
    %c0_i32 = arith.constant 0 : i32
    %c0_i32_0 = arith.constant 0 : i32
    %c0_i32_1 = arith.constant 0 : i32
    return %c0_i32, %c0_i32_0 : i32, i32
  }
  func.func @transform_2(%arg0: i32) -> (i32, i32) {
    %c0_i32 = arith.constant 0 : i32
    %c0_i32_0 = arith.constant 0 : i32
    %c0_i32_1 = arith.constant 0 : i32
    return %c0_i32, %c0_i32_0 : i32, i32
  }
  func.func @transform_3(%arg0: i32) -> (i32, i32) {
    %c0_i32 = arith.constant 0 : i32
    %c0_i32_0 = arith.constant 0 : i32
    %c0_i32_1 = arith.constant 0 : i32
    return %c0_i32, %c0_i32_0 : i32, i32
  }
  func.func @transform_4(%arg0: i32) -> (i32, i32) {
    %c0_i32 = arith.constant 0 : i32
    %c0_i32_0 = arith.constant 0 : i32
    %c0_i32_1 = arith.constant 0 : i32
    return %c0_i32, %c0_i32_0 : i32, i32
  }
  func.func @transform_5(%arg0: i32) -> (i32, i32) {
    %c0_i32 = arith.constant 0 : i32
    %c0_i32_0 = arith.constant 0 : i32
    %c0_i32_1 = arith.constant 0 : i32
    return %c0_i32, %c0_i32_0 : i32, i32
  }
  func.func @transform_6(%arg0: i32) -> (i32, i32) {
    %c0_i32 = arith.constant 0 : i32
    %c0_i32_0 = arith.constant 0 : i32
    %c0_i32_1 = arith.constant 0 : i32
    return %c0_i32, %c0_i32_0 : i32, i32
  }
  func.func @transform_7(%arg0: i32) -> (i32, i32) {
    %c0_i32 = arith.constant 0 : i32
    %c0_i32_0 = arith.constant 0 : i32
    %c0_i32_1 = arith.constant 0 : i32
    return %c0_i32, %c0_i32_0 : i32, i32
  }
  func.func @transform_8(%arg0: i32) -> (i32, i32) {
    %c0_i32 = arith.constant 0 : i32
    %c0_i32_0 = arith.constant 0 : i32
    %c0_i32_1 = arith.constant 0 : i32
    return %c0_i32, %c0_i32_0 : i32, i32
  }
  func.func @transform_9(%arg0: i32) -> (i32, i32) {
    %c0_i32 = arith.constant 0 : i32
    %c0_i32_0 = arith.constant 0 : i32
    %c0_i32_1 = arith.constant 0 : i32
    return %c0_i32, %c0_i32_0 : i32, i32
  }
  func.func @transform_10(%arg0: i32) -> (i32, i32, i32) {
    %c0_i32 = arith.constant 0 : i32
    %c0_i32_0 = arith.constant 0 : i32
    %c0_i32_1 = arith.constant 0 : i32
    return %arg0, %c0_i32, %c0_i32_0 : i32, i32, i32
  }
}

</mosaic_0001>

<llo_original>
// kernel: tpu_custom_call.1
$region0: #{tpu_custom_call.1}
  #allocation0 [shape = 'u32[]', space=smem, size = 0x4, offset = 0x4, fixed_abs, tag = 'smem constant byte address 0x4 - core index']
  #allocation1 [shape = 'u32[144,128]{1,0:T(1,128)}', space=vmem, size = 0x12000, scoped, tag = 'internal scratch']
  %s0 = inlined_call_operand.vmem [shape: f32[2,32,256], index: 0, kind: input, shape index: {}]
  %s1 = inlined_call_operand.hbm [shape: bf16[16,32], index: 1, kind: input, shape index: {}]
  %s2 = inlined_call_operand.vmem [shape: f32[16,1], index: 2, kind: input, shape index: {}]
  %s3 = inlined_call_operand.vmem [shape: f32[16,1], index: 3, kind: input, shape index: {}]
  %s4 = inlined_call_operand.vmem [shape: f32[16,9], index: 4, kind: input, shape index: {}]
  %s5 = inlined_call_operand.vmem [shape: f32[16,1], index: 5, kind: input, shape index: {}]
  %s6 = inlined_call_operand.vmem [shape: f32[16,1], index: 6, kind: input, shape index: {}]
  %s7 = inlined_call_operand.vmem [shape: bf16[32,16], index: 7, kind: input, shape index: {}]
  %s8 = inlined_call_operand.vmem [shape: f32[32,1], index: 8, kind: input, shape index: {}]
  %s9 = inlined_call_operand.vmem [shape: f32[32,1], index: 9, kind: input, shape index: {}]
  %s10 = inlined_call_operand.hbm [shape: f32[2,32,256], index: 10, kind: output, shape index: {}]
  %s11 = sld [smem:[#allocation0]]
  $region77: #{tpu_custom_call.1} parent=0
    _
  %s13 = ssub.s32 1, %s11
  %s14 = scalar_select 0, %s13, %s11
  $region1: #{tpu_custom_call.1} parent=0
    #allocation2 [shape = 'u8[4096]{0}', space=vmem, size = 0x1000, scoped, tag = 'input window, operand 1, single buffered']
    #allocation3 [shape = 's32[2]{0}', space=sflag, size = 0x8, scoped, tag = 'scoped memory for tpu_custom_call.1']
    #allocation4 [shape = 's32[2]{0}', space=sflag, size = 0x8, scoped, tag = 'scoped memory for tpu_custom_call.1']
    #allocation5 [shape = 'u8[65536]{0}', space=vmem, size = 0x10000, scoped, tag = 'output window, operand 0']
    %15 = vsyncpa [#allocation3], 0
    %16 = vsyncpa [#allocation4], 0
    %s17 = scalar_lea.sflag [#allocation4], 1
    %18 = vsyncpa %s17, 0
    loop: start=0, step=1, limit=4
    $region2: #{tpu_custom_call.1} parent=1 // loop_pre_header
      _
    $region3: #{tpu_custom_call.1} parent=1 // loop_header
      %s20 = sphi 0, %s24
      %p21 = scmp.ge.s32.totalorder %s20, 4
      %s30 = sphi 0, %s32
      %s33 = sphi 0, %s30
      %s34 = sphi 0, %s33
      %s50 = sphi 0, %s34
      %s54 = sphi 0, %s54
      %s56 = sphi 0, %s54
      %s57 = sphi 0, %s56
      %s71 = sphi 0, %s57
      %s75 = sphi 0, %s75
      %s77 = sphi 0, %s75
      %s78 = sphi 0, %s77
      %s92 = sphi 0, %s78
      %s96 = sphi 0, %s96
      %s98 = sphi 0, %s96
      %s99 = sphi 0, %s98
      %s113 = sphi 0, %s99
      %s117 = sphi 0, %s117
      %s119 = sphi 0, %s117
      %s120 = sphi 0, %s119
      %s134 = sphi 0, %s120
      %s138 = sphi 0, %s138
      %s140 = sphi 0, %s138
      %s141 = sphi 0, %s140
      %s155 = sphi 0, %s141
      %s159 = sphi 0, %s159
      %s161 = sphi 0, %s159
      %s162 = sphi 0, %s161
      %s176 = sphi 0, %s162
      %s180 = sphi 0, %s180
      %s182 = sphi 0, %s180
      %s183 = sphi 0, %s182
      %s197 = sphi 0, %s183
      %s201 = sphi 0, %s201
      %s203 = sphi 0, %s201
      %s204 = sphi 0, %s203
      %s218 = sphi 0, %s204
      %s222 = sphi 0, %s222
      %s224 = sphi 0, %s222
      %s225 = sphi 0, %s224
      %s239 = sphi 0, %s225
      %s245 = sphi 0, %s247
      %s248 = sphi 0, %s245
      %s249 = sphi 0, %s248
      %s265 = sphi 0, %s249
    $region4: #{tpu_custom_call.1} parent=1 // loop_header_branch
      %23 = sbr.rel (%p21) target = $region8
    $region5: #{tpu_custom_call.1} parent=1 // loop_body
      %s25 = ssub.s32 %s20, 1
      %s26 = ssub.s32 %s20, 2
      %s27 = sadd.s32 %s20, 1
      %s28 = ssub.s32 %s20, %s27
      %p29 = scmp.eq.s32.totalorder %s28, 0
      %s31 = sadd.s32 %s30, 1
      %s32 = scalar_select %p29, %s30, %s31
      %p35 = pneg %p29
      %p36 = scmp.eq.s32.totalorder %s20, 1
      %p37 = por %p35, %p36
      %p38 = scmp.ne.s32.totalorder %s30, %s33
      %p39 = scmp.eq.s32.totalorder %s20, 0
      %p40 = por %p38, %p39
      %p41 = scmp.ne.s32.totalorder %s30, %s33
      %p42 = scmp.eq.s32.totalorder %s25, 1
      %p43 = por %p41, %p42
      %p44 = scmp.ne.s32.totalorder %s33, %s34
      %p45 = scmp.eq.s32.totalorder %s25, 0
      %p46 = por %p44, %p45
      %p47 = scmp.ne.s32.totalorder %s33, %s34
      %p48 = scmp.eq.s32.totalorder %s26, 1
      %p49 = por %p47, %p48
      %p51 = scmp.ne.s32.totalorder %s34, %s50
      %p52 = scmp.eq.s32.totalorder %s26, 0
      %p53 = por %p51, %p52
      %s55 = sadd.s32 %s54, 1
      %p58 = scmp.eq.s32.totalorder %s20, 1
      %p59 = scmp.ne.s32.totalorder %s54, %s56
      %p60 = scmp.eq.s32.totalorder %s20, 0
      %p61 = por %p59, %p60
      %p62 = scmp.ne.s32.totalorder %s54, %s56
      %p63 = scmp.eq.s32.totalorder %s25, 1
      %p64 = por %p62, %p63
      %p65 = scmp.ne.s32.totalorder %s56, %s57
      %p66 = scmp.eq.s32.totalorder %s25, 0
      %p67 = por %p65, %p66
      %p68 = scmp.ne.s32.totalorder %s56, %s57
      %p69 = scmp.eq.s32.totalorder %s26, 1
      %p70 = por %p68, %p69
      %p72 = scmp.ne.s32.totalorder %s57, %s71
      %p73 = scmp.eq.s32.totalorder %s26, 0
      %p74 = por %p72, %p73
      %s76 = sadd.s32 %s75, 1
      %p79 = scmp.eq.s32.totalorder %s20, 1
      %p80 = scmp.ne.s32.totalorder %s75, %s77
      %p81 = scmp.eq.s32.totalorder %s20, 0
      %p82 = por %p80, %p81
      %p83 = scmp.ne.s32.totalorder %s75, %s77
      %p84 = scmp.eq.s32.totalorder %s25, 1
      %p85 = por %p83, %p84
      %p86 = scmp.ne.s32.totalorder %s77, %s78
      %p87 = scmp.eq.s32.totalorder %s25, 0
      %p88 = por %p86, %p87
      %p89 = scmp.ne.s32.totalorder %s77, %s78
      %p90 = scmp.eq.s32.totalorder %s26, 1
      %p91 = por %p89, %p90
      %p93 = scmp.ne.s32.totalorder %s78, %s92
      %p94 = scmp.eq.s32.totalorder %s26, 0
      %p95 = por %p93, %p94
      %s97 = sadd.s32 %s96, 1
      %p100 = scmp.eq.s32.totalorder %s20, 1
      %p101 = scmp.ne.s32.totalorder %s96, %s98
      %p102 = scmp.eq.s32.totalorder %s20, 0
      %p103 = por %p101, %p102
      %p104 = scmp.ne.s32.totalorder %s96, %s98
      %p105 = scmp.eq.s32.totalorder %s25, 1
      %p106 = por %p104, %p105
      %p107 = scmp.ne.s32.totalorder %s98, %s99
      %p108 = scmp.eq.s32.totalorder %s25, 0
      %p109 = por %p107, %p108
      %p110 = scmp.ne.s32.totalorder %s98, %s99
      %p111 = scmp.eq.s32.totalorder %s26, 1
      %p112 = por %p110, %p111
      %p114 = scmp.ne.s32.totalorder %s99, %s113
      %p115 = scmp.eq.s32.totalorder %s26, 0
      %p116 = por %p114, %p115
      %s118 = sadd.s32 %s117, 1
      %p121 = scmp.eq.s32.totalorder %s20, 1
      %p122 = scmp.ne.s32.totalorder %s117, %s119
      %p123 = scmp.eq.s32.totalorder %s20, 0
      %p124 = por %p122, %p123
      %p125 = scmp.ne.s32.totalorder %s117, %s119
      %p126 = scmp.eq.s32.totalorder %s25, 1
      %p127 = por %p125, %p126
      %p128 = scmp.ne.s32.totalorder %s119, %s120
      %p129 = scmp.eq.s32.totalorder %s25, 0
      %p130 = por %p128, %p129
      %p131 = scmp.ne.s32.totalorder %s119, %s120
      %p132 = scmp.eq.s32.totalorder %s26, 1
      %p133 = por %p131, %p132
      %p135 = scmp.ne.s32.totalorder %s120, %s134
      %p136 = scmp.eq.s32.totalorder %s26, 0
      %p137 = por %p135, %p136
      %s139 = sadd.s32 %s138, 1
      %p142 = scmp.eq.s32.totalorder %s20, 1
      %p143 = scmp.ne.s32.totalorder %s138, %s140
      %p144 = scmp.eq.s32.totalorder %s20, 0
      %p145 = por %p143, %p144
      %p146 = scmp.ne.s32.totalorder %s138, %s140
      %p147 = scmp.eq.s32.totalorder %s25, 1
      %p148 = por %p146, %p147
      %p149 = scmp.ne.s32.totalorder %s140, %s141
      %p150 = scmp.eq.s32.totalorder %s25, 0
      %p151 = por %p149, %p150
      %p152 = scmp.ne.s32.totalorder %s140, %s141
      %p153 = scmp.eq.s32.totalorder %s26, 1
      %p154 = por %p152, %p153
      %p156 = scmp.ne.s32.totalorder %s141, %s155
      %p157 = scmp.eq.s32.totalorder %s26, 0
      %p158 = por %p156, %p157
      %s160 = sadd.s32 %s159, 1
      %p163 = scmp.eq.s32.totalorder %s20, 1
      %p164 = scmp.ne.s32.totalorder %s159, %s161
      %p165 = scmp.eq.s32.totalorder %s20, 0
      %p166 = por %p164, %p165
      %p167 = scmp.ne.s32.totalorder %s159, %s161
      %p168 = scmp.eq.s32.totalorder %s25, 1
      %p169 = por %p167, %p168
      %p170 = scmp.ne.s32.totalorder %s161, %s162
      %p171 = scmp.eq.s32.totalorder %s25, 0
      %p172 = por %p170, %p171
      %p173 = scmp.ne.s32.totalorder %s161, %s162
      %p174 = scmp.eq.s32.totalorder %s26, 1
      %p175 = por %p173, %p174
      %p177 = scmp.ne.s32.totalorder %s162, %s176
      %p178 = scmp.eq.s32.totalorder %s26, 0
      %p179 = por %p177, %p178
      %s181 = sadd.s32 %s180, 1
      %p184 = scmp.eq.s32.totalorder %s20, 1
      %p185 = scmp.ne.s32.totalorder %s180, %s182
      %p186 = scmp.eq.s32.totalorder %s20, 0
      %p187 = por %p185, %p186
      %p188 = scmp.ne.s32.totalorder %s180, %s182
      %p189 = scmp.eq.s32.totalorder %s25, 1
      %p190 = por %p188, %p189
      %p191 = scmp.ne.s32.totalorder %s182, %s183
      %p192 = scmp.eq.s32.totalorder %s25, 0
      %p193 = por %p191, %p192
      %p194 = scmp.ne.s32.totalorder %s182, %s183
      %p195 = scmp.eq.s32.totalorder %s26, 1
      %p196 = por %p194, %p195
      %p198 = scmp.ne.s32.totalorder %s183, %s197
      %p199 = scmp.eq.s32.totalorder %s26, 0
      %p200 = por %p198, %p199
      %s202 = sadd.s32 %s201, 1
      %p205 = scmp.eq.s32.totalorder %s20, 1
      %p206 = scmp.ne.s32.totalorder %s201, %s203
      %p207 = scmp.eq.s32.totalorder %s20, 0
      %p208 = por %p206, %p207
      %p209 = scmp.ne.s32.totalorder %s201, %s203
      %p210 = scmp.eq.s32.totalorder %s25, 1
      %p211 = por %p209, %p210
      %p212 = scmp.ne.s32.totalorder %s203, %s204
      %p213 = scmp.eq.s32.totalorder %s25, 0
      %p214 = por %p212, %p213
      %p215 = scmp.ne.s32.totalorder %s203, %s204
      %p216 = scmp.eq.s32.totalorder %s26, 1
      %p217 = por %p215, %p216
      %p219 = scmp.ne.s32.totalorder %s204, %s218
      %p220 = scmp.eq.s32.totalorder %s26, 0
      %p221 = por %p219, %p220
      %s223 = sadd.s32 %s222, 1
      %p226 = scmp.eq.s32.totalorder %s20, 1
      %p227 = scmp.ne.s32.totalorder %s222, %s224
      %p228 = scmp.eq.s32.totalorder %s20, 0
      %p229 = por %p227, %p228
      %p230 = scmp.ne.s32.totalorder %s222, %s224
      %p231 = scmp.eq.s32.totalorder %s25, 1
      %p232 = por %p230, %p231
      %p233 = scmp.ne.s32.totalorder %s224, %s225
      %p234 = scmp.eq.s32.totalorder %s25, 0
      %p235 = por %p233, %p234
      %p236 = scmp.ne.s32.totalorder %s224, %s225
      %p237 = scmp.eq.s32.totalorder %s26, 1
      %p238 = por %p236, %p237
      %p240 = scmp.ne.s32.totalorder %s225, %s239
      %p241 = scmp.eq.s32.totalorder %s26, 0
      %p242 = por %p240, %p241
      %s243 = ssub.s32 %s20, %s27
      %p244 = scmp.eq.s32.totalorder %s243, 0
      %s246 = sadd.s32 %s245, 1
      %s247 = scalar_select %p244, %s245, %s246
      %p250 = pneg %p244
      %p251 = scmp.eq.s32.totalorder %s20, 1
      %p252 = por %p250, %p251
      %p253 = scmp.ne.s32.totalorder %s245, %s248
      %p254 = scmp.eq.s32.totalorder %s20, 0
      %p255 = por %p253, %p254
      %p256 = scmp.ne.s32.totalorder %s245, %s248
      %p257 = scmp.eq.s32.totalorder %s25, 1
      %p258 = por %p256, %p257
      %p259 = scmp.ne.s32.totalorder %s248, %s249
      %p260 = scmp.eq.s32.totalorder %s25, 0
      %p261 = por %p259, %p260
      %p262 = scmp.ne.s32.totalorder %s248, %s249
      %p263 = scmp.eq.s32.totalorder %s26, 1
      %p264 = por %p262, %p263
      %p266 = scmp.ne.s32.totalorder %s249, %s265
      %p267 = scmp.eq.s32.totalorder %s26, 0
      %p268 = por %p266, %p267
      %p269 = scmp.le.s32.totalorder 1, %s20
      %p270 = scmp.lt.s32.totalorder %s20, 3
      %p271 = pnand %p269, %p270
      %p272 = pneg %p271
      // Predicated region
      $region9: #{tpu_custom_call.1} parent=5 // pred_check
        _
      $region10: #{tpu_custom_call.1} parent=5 // pred_check_branch
        %274 = sbr.rel (%p271) target = $region12
      $region11: #{tpu_custom_call.1} parent=5 // pred_region
        %s275 = ssub.s32 %s20, 1
        // Predicated region
        $region13: #{tpu_custom_call.1} parent=11 // pred_check
          %p276 = pneg %p67
        $region14: #{tpu_custom_call.1} parent=11 // pred_check_branch
          %278 = sbr.rel (%p276) target = $region16
        $region15: #{tpu_custom_call.1} parent=11 // pred_region
          %s280 = ssub.s32 128, 128
          %281 = vsyncadd [#allocation3], %s280
          %s282 = sshll.u32 [#allocation2], 4
          %s283 = int_to_ptr.vmem [resolvable:$true] %s282
          %288 = dma.hbm_to_vmem [thread:$0]  %s1, 128, %s283, [#allocation3], 64, 64, 4
        $region16: #{tpu_custom_call.1} parent=11 // pred_fallthru
          _
        // Predicated region
        $region17: #{tpu_custom_call.1} parent=11 // pred_check
          %p289 = pneg %p88
        $region18: #{tpu_custom_call.1} parent=11 // pred_check_branch
          %291 = sbr.rel (%p289) target = $region20
        $region19: #{tpu_custom_call.1} parent=11 // pred_region
          _
        $region20: #{tpu_custom_call.1} parent=11 // pred_fallthru
          _
        // Predicated region
        $region21: #{tpu_custom_call.1} parent=11 // pred_check
          %p292 = pneg %p109
        $region22: #{tpu_custom_call.1} parent=11 // pred_check_branch
          %294 = sbr.rel (%p292) target = $region24
        $region23: #{tpu_custom_call.1} parent=11 // pred_region
          _
        $region24: #{tpu_custom_call.1} parent=11 // pred_fallthru
          _
        // Predicated region
        $region25: #{tpu_custom_call.1} parent=11 // pred_check
          %p295 = pneg %p130
        $region26: #{tpu_custom_call.1} parent=11 // pred_check_branch
          %297 = sbr.rel (%p295) target = $region28
        $region27: #{tpu_custom_call.1} parent=11 // pred_region
          _
        $region28: #{tpu_custom_call.1} parent=11 // pred_fallthru
          _
        // Predicated region
        $region29: #{tpu_custom_call.1} parent=11 // pred_check
          %p298 = pneg %p151
        $region30: #{tpu_custom_call.1} parent=11 // pred_check_branch
          %300 = sbr.rel (%p298) target = $region32
        $region31: #{tpu_custom_call.1} parent=11 // pred_region
          _
        $region32: #{tpu_custom_call.1} parent=11 // pred_fallthru
          _
        // Predicated region
        $region33: #{tpu_custom_call.1} parent=11 // pred_check
          %p301 = pneg %p172
        $region34: #{tpu_custom_call.1} parent=11 // pred_check_branch
          %303 = sbr.rel (%p301) target = $region36
        $region35: #{tpu_custom_call.1} parent=11 // pred_region
          _
        $region36: #{tpu_custom_call.1} parent=11 // pred_fallthru
          _
        // Predicated region
        $region37: #{tpu_custom_call.1} parent=11 // pred_check
          %p304 = pneg %p193
        $region38: #{tpu_custom_call.1} parent=11 // pred_check_branch
          %306 = sbr.rel (%p304) target = $region40
        $region39: #{tpu_custom_call.1} parent=11 // pred_region
          _
        $region40: #{tpu_custom_call.1} parent=11 // pred_fallthru
          _
        // Predicated region
        $region41: #{tpu_custom_call.1} parent=11 // pred_check
          %p307 = pneg %p214
        $region42: #{tpu_custom_call.1} parent=11 // pred_check_branch
          %309 = sbr.rel (%p307) target = $region44
        $region43: #{tpu_custom_call.1} parent=11 // pred_region
          _
        $region44: #{tpu_custom_call.1} parent=11 // pred_fallthru
          _
        // Predicated region
        $region45: #{tpu_custom_call.1} parent=11 // pred_check
          %p310 = pneg %p235
        $region46: #{tpu_custom_call.1} parent=11 // pred_check_branch
          %312 = sbr.rel (%p310) target = $region48
        $region47: #{tpu_custom_call.1} parent=11 // pred_region
          _
        $region48: #{tpu_custom_call.1} parent=11 // pred_fallthru
          _
      $region12: #{tpu_custom_call.1} parent=5 // pred_fallthru
        _
      %p313 = scmp.lt.s32.totalorder %s20, 2
      // Predicated region
      $region49: #{tpu_custom_call.1} parent=5 // pred_check
        %p314 = pneg %p313
      $region50: #{tpu_custom_call.1} parent=5 // pred_check_branch
        %316 = sbr.rel (%p314) target = $region52
      $region51: #{tpu_custom_call.1} parent=5 // pred_region
        // Predicated region
        $region53: #{tpu_custom_call.1} parent=51 // pred_check
          %p317 = pneg %p40
        $region54: #{tpu_custom_call.1} parent=51 // pred_check_branch
          %319 = sbr.rel (%p317) target = $region56
        $region55: #{tpu_custom_call.1} parent=51 // pred_region
          %p320 = scmp.lt.s32.totalorder %s20, 1
          %s321 = scalar_select %p320, %s20, 1
          %s322 = smul.addr %s321, 8
          %s323 = smul.addr %s322, 8
          %s324 = scalar_lea.vmem %s0, %s323
        $region56: #{tpu_custom_call.1} parent=51 // pred_fallthru
          _
      $region52: #{tpu_custom_call.1} parent=5 // pred_fallthru
        _
      %p325 = scmp.le.s32.totalorder 1, %s20
      %p326 = scmp.lt.s32.totalorder %s20, 3
      %p327 = pnand %p325, %p326
      %p328 = pneg %p327
      // Predicated region
      $region57: #{tpu_custom_call.1} parent=5 // pred_check
        _
      $region58: #{tpu_custom_call.1} parent=5 // pred_check_branch
        %330 = sbr.rel (%p327) target = $region60
      $region59: #{tpu_custom_call.1} parent=5 // pred_region
        %s331 = ssub.s32 %s20, 1
        // Predicated region
        $region61: #{tpu_custom_call.1} parent=59 // pred_check
          %p332 = pneg %p67
        $region62: #{tpu_custom_call.1} parent=59 // pred_check_branch
          %334 = sbr.rel (%p332) target = $region64
        $region63: #{tpu_custom_call.1} parent=59 // pred_region
          %335 = dma.done [#allocation3], 128
        $region64: #{tpu_custom_call.1} parent=59 // pred_fallthru
          _
        %p336 = scmp.lt.s32.totalorder %s25, 1
        %s337 = scalar_select %p336, %s25, 1
        %s338 = smul.addr %s337, 8
        %s339 = smul.addr %s338, 8
        %s340 = scalar_lea.vmem %s0, %s339
        %p341 = pneg %p46
        %p342 = pneg %p43
        %p343 = pneg %p67
        %p344 = pneg %p64
        %p345 = pneg %p88
        %p346 = pneg %p85
        %p347 = pneg %p109
        %p348 = pneg %p106
        %p349 = pneg %p130
        %p350 = pneg %p127
        %p351 = pneg %p151
        %p352 = pneg %p148
        %p353 = pneg %p172
        %p354 = pneg %p169
        %p355 = pneg %p193
        %p356 = pneg %p190
        %p357 = pneg %p214
        %p358 = pneg %p211
        %p359 = pneg %p235
        %p360 = pneg %p232
        %p361 = pneg %p261
        %p362 = pneg %p258
        %s363 = sand.u32 %s248, 1
        %s364 = scalar_lea.sflag [#allocation4], %s363
        %s365 = sand.u32 %s248, 1
        %s366 = smul.addr %s365, 64
        %s367 = scalar_lea.vmem [#allocation5], %s366
        %p368 = scmp.lt.s32.totalorder %s25, 1
        %s369 = scalar_select %p368, %s25, 1
        %s370 = smul.addr %s369, 8
        %s371 = smul.addr %s370, 8
        %s372 = scalar_lea.vmem %s0, %s371
        %v374 = vld [vmem:[%s372] sm:$0xff]
        %v375 = vld [vmem:[%s372 + $0x8] sm:$0xff]
        %v376 = vld [vmem:[%s372 + $0x10] sm:$0xff]
        %v377 = vld [vmem:[%s372 + $0x18] sm:$0xff]
        %v378 = vld [vmem:[%s372 + $0x20] sm:$0xff]
        %v379 = vld [vmem:[%s372 + $0x28] sm:$0xff]
        %v380 = vld [vmem:[%s372 + $0x30] sm:$0xff]
        %v381 = vld [vmem:[%s372 + $0x38] sm:$0xff]
        %v382 = vld [vmem:[#allocation2] sm:$0xf]
        %v383 = vld [vmem:[#allocation2 + $0x4] sm:$0xf]
        %v384 = vpack.c.bf16 %v376, %v374
        %v385 = vpack.c.bf16 %v377, %v375
        %v386 = vpack.c.bf16 %v380, %v378
        %v387 = vpack.c.bf16 %v381, %v379
        %v390 = vunpack.c.l.b16 %v382
        %v391 = vunpack.c.l.b16 %v383
        %v392 = vpack.c.b16 %v391, %v390
        %vm393 = vcmask 261120
        %v395 = vsel %vm393, %v392, 0
        %397 = vmatprep.subr.bf16.mxu0 0
        %398 = vmatpush1.bf16.msra.mxu0 0
        %399 = vmatprep.subr.bf16.mxu0 0
        %400 = vmatpush1.bf16.msra.mxu0 0
        %401 = vmatprep.subr.bf16.mxu0 0
        %402 = vmatpush1.bf16.msra.mxu0 0
        %403 = vmatprep.subr.bf16.mxu0 0
        %404 = vmatpush1.bf16.msra.mxu0 0
        %405 = vmatprep.subr.bf16.mxu0 0
        %406 = vmatpush1.bf16.msra.mxu0 0
        %407 = vmatprep.subr.bf16.mxu0 0
        %408 = vmatpush1.bf16.msra.mxu0 0
        %409 = vmatprep.subr.bf16.mxu0 %v387
        %410 = vmatpush1.bf16.msra.mxu0 %v386
        %411 = vmatprep.subr.bf16.mxu0 %v385
        %412 = vmatpush1.bf16.msra.mxu0 %v384
        %413 = vmatprep.subr.bf16.mxu0 0
        %414 = vmatpush2.bf16.msra.mxu0 0
        %415 = vmatprep.subr.bf16.mxu0 0
        %416 = vmatpush2.bf16.msra.mxu0 0
        %417 = vmatprep.subr.bf16.mxu0 0
        %418 = vmatpush2.bf16.msra.mxu0 0
        %419 = vmatprep.subr.bf16.mxu0 0
        %420 = vmatpush2.bf16.msra.mxu0 0
        %421 = vmatprep.subr.bf16.mxu0 0
        %422 = vmatpush2.bf16.msra.mxu0 0
        %423 = vmatprep.subr.bf16.mxu0 0
        %424 = vmatpush2.bf16.msra.mxu0 0
        %425 = vmatprep.subr.bf16.mxu0 0
        %426 = vmatpush2.bf16.msra.mxu0 0
        %427 = vmatprep.subr.bf16.mxu0 0
        %428 = vmatpush2.bf16.msra.mxu0 0
        %429 = vmatprep.mubr.bf16.mxu0 0
        %430 = vmatmul.mubr.bf16.gmra.mxu0 %v395
        %v431 = vpop.f32.mrf.mxu0
        %v432 = vadd.f32 0.0, %v431
        %v433 = vpop.f32.mrf.mxu0
        %v434 = vadd.f32 0.0, %v433
        %v435 = vpop.f32.mrf.mxu0
        %v436 = vadd.f32 0.0, %v435
        %v437 = vpop.f32.mrf.mxu0
        %v438 = vadd.f32 0.0, %v437
        %439 = vdwg.mxu0
        %v440 = vld [vmem:[%s2] sm:$0xff]
        %v441 = vld [vmem:[%s2 + $0x8] sm:$0xff]
        %443 = vset.pattern.permute.xlu0 0
        %444 = vperm.xlu0 %443, %v440
        %v445 = vpop.permute.xlu0 %444
        %448 = vset.pattern.permute.xlu0 0
        %449 = vperm.xlu0 %448, %v441
        %v450 = vpop.permute.xlu0 %449
        %v452 = vmul.f32 %v432, %v445
        %v453 = vmul.f32 %v434, %v445
        %v454 = vmul.f32 %v436, %v450
        %v455 = vmul.f32 %v438, %v450
        %v456 = vld [vmem:[%s3] sm:$0xff]
        %v457 = vld [vmem:[%s3 + $0x8] sm:$0xff]
        %459 = vset.pattern.permute.xlu0 0
        %460 = vperm.xlu0 %459, %v456
        %v461 = vpop.permute.xlu0 %460
        %464 = vset.pattern.permute.xlu0 0
        %465 = vperm.xlu0 %464, %v457
        %v466 = vpop.permute.xlu0 %465
        %v468 = vadd.f32 %v452, %v461
        %v469 = vadd.f32 %v453, %v461
        %v470 = vadd.f32 %v454, %v466
        %v471 = vadd.f32 %v455, %v466
        %vm472 = vcmp.gt.f32.partialorder %v468, 0.0
        %vm473 = vcmp.gt.f32.partialorder %v469, 0.0
        %vm474 = vcmp.gt.f32.partialorder %v470, 0.0
        %vm475 = vcmp.gt.f32.partialorder %v471, 0.0
        %v476 = vmin.f32 %v468, 0.0
        %v477 = vmin.f32 %v469, 0.0
        %v478 = vmin.f32 %v470, 0.0
        %v479 = vmin.f32 %v471, 0.0
        %v480 = vmul.f32 %v476, 1.442695
        %v481 = vpow.pop %v480
        %v482 = vmul.f32 %v477, 1.442695
        %v483 = vpow.pop %v482
        %v484 = vmul.f32 %v478, 1.442695
        %v485 = vpow.pop %v484
        %v486 = vmul.f32 %v479, 1.442695
        %v487 = vpow.pop %v486
        %v488 = vsub.f32 %v481, 1.0
        %v489 = vsub.f32 %v483, 1.0
        %v490 = vsub.f32 %v485, 1.0
        %v491 = vsub.f32 %v487, 1.0
        %v492 = vsel %vm472, %v468, %v488
        %v493 = vsel %vm473, %v469, %v489
        %v494 = vsel %vm474, %v470, %v490
        %v495 = vsel %vm475, %v471, %v491
        %v496 = vlaneseq
        %v497 = vand.u32 %v496, 127
        %v498 = vadd.s32 %v497, 128
        %v499 = vand.u32 %v497, 15
        %v500 = vand.u32 %v498, 15
        %v501 = vshra.s32 %v497, 4
        %v502 = vshra.s32 %v498, 4
        %v503 = vld [vmem:[%s4] sm:$0xff]
        %v504 = vld [vmem:[%s4 + $0x8] sm:$0xff]
        %506 = vset.pattern.permute.xlu0 4
        %507 = vperm.xlu0 %506, %v503
        %v508 = vpop.permute.xlu0 %507
        %511 = vset.pattern.permute.xlu0 4
        %512 = vperm.xlu0 %511, %v504
        %v513 = vpop.permute.xlu0 %512
        %v515 = vmul.f32 %v492, %v508
        %v516 = vmul.f32 %v493, %v508
        %v517 = vmul.f32 %v494, %v513
        %v518 = vmul.f32 %v495, %v513
        %519 = vrot.lane.b32.xlu0 %v492, 17
        %v520 = vpop.permute.xlu0 %519
        %521 = vrot.lane.b32.xlu0 %v494, 17
        %v522 = vpop.permute.xlu0 %521
        %523 = vrot.lane.b32.xlu0 %v493, 17
        %v524 = vpop.permute.xlu0 %523
        %525 = vrot.lane.b32.xlu0 %v495, 17
        %v526 = vpop.permute.xlu0 %525
        %vm527 = vcmp.lt.s32.totalorder %v497, 17
        %v528 = vsel %vm527, %v520, %v524
        %v529 = vsel %vm527, %v522, %v526
        %v530 = vsel %vm527, %v524, %v520
        %v531 = vsel %vm527, %v526, %v522
        %vm532 = vcmp.ge.s32.totalorder %v501, 1
        %vm533 = vcmp.ge.s32.totalorder %v502, 1
        %vm534 = vcmp.ge.s32.totalorder %v499, 1
        %vm535 = vcmp.ge.s32.totalorder %v500, 1
        %vm536 = vmand %vm532, %vm534
        %vm537 = vmand %vm533, %vm535
        %v538 = vsel %vm536, %v530, 0.0
        %v539 = vsel %vm537, %v528, 0.0
        %v540 = vsel %vm536, %v531, 0.0
        %v541 = vsel %vm537, %v529, 0.0
        %542 = vset.pattern.permute.xlu0 0
        %543 = vperm.xlu0 %542, %v503
        %v544 = vpop.permute.xlu0 %543
        %546 = vset.pattern.permute.xlu0 0
        %547 = vperm.xlu0 %546, %v504
        %v548 = vpop.permute.xlu0 %547
        %v550 = vmul.f32 %v538, %v544
        %v551 = vmul.f32 %v539, %v544
        %v552 = vmul.f32 %v540, %v548
        %v553 = vmul.f32 %v541, %v548
        %v554 = vadd.f32 %v515, %v550
        %v555 = vadd.f32 %v516, %v551
        %v556 = vadd.f32 %v517, %v552
        %v557 = vadd.f32 %v518, %v553
        %558 = vrot.lane.b32.xlu0 %v492, 16
        %v559 = vpop.permute.xlu0 %558
        %560 = vrot.lane.b32.xlu0 %v494, 16
        %v561 = vpop.permute.xlu0 %560
        %562 = vrot.lane.b32.xlu0 %v493, 16
        %v563 = vpop.permute.xlu0 %562
        %564 = vrot.lane.b32.xlu0 %v495, 16
        %v565 = vpop.permute.xlu0 %564
        %vm566 = vcmp.lt.s32.totalorder %v497, 16
        %v567 = vsel %vm566, %v559, %v563
        %v568 = vsel %vm566, %v561, %v565
        %v569 = vsel %vm566, %v563, %v559
        %v570 = vsel %vm566, %v565, %v561
        %v571 = vsel %vm532, %v569, 0.0
        %v572 = vsel %vm533, %v567, 0.0
        %v573 = vsel %vm532, %v570, 0.0
        %v574 = vsel %vm533, %v568, 0.0
        %575 = vset.pattern.permute.xlu0 1
        %576 = vperm.xlu0 %575, %v503
        %v577 = vpop.permute.xlu0 %576
        %579 = vset.pattern.permute.xlu0 1
        %580 = vperm.xlu0 %579, %v504
        %v581 = vpop.permute.xlu0 %580
        %v583 = vmul.f32 %v571, %v577
        %v584 = vmul.f32 %v572, %v577
        %v585 = vmul.f32 %v573, %v581
        %v586 = vmul.f32 %v574, %v581
        %v587 = vadd.f32 %v554, %v583
        %v588 = vadd.f32 %v555, %v584
        %v589 = vadd.f32 %v556, %v585
        %v590 = vadd.f32 %v557, %v586
        %591 = vrot.lane.b32.xlu0 %v492, 15
        %v592 = vpop.permute.xlu0 %591
        %593 = vrot.lane.b32.xlu0 %v494, 15
        %v594 = vpop.permute.xlu0 %593
        %595 = vrot.lane.b32.xlu0 %v493, 15
        %v596 = vpop.permute.xlu0 %595
        %597 = vrot.lane.b32.xlu0 %v495, 15
        %v598 = vpop.permute.xlu0 %597
        %vm599 = vcmp.lt.s32.totalorder %v497, 15
        %v600 = vsel %vm599, %v592, %v596
        %v601 = vsel %vm599, %v594, %v598
        %v602 = vsel %vm599, %v596, %v592
        %v603 = vsel %vm599, %v598, %v594
        %vm604 = vcmp.lt.s32.totalorder %v499, 15
        %vm605 = vcmp.lt.s32.totalorder %v500, 15
        %vm606 = vmand %vm532, %vm604
        %vm607 = vmand %vm533, %vm605
        %v608 = vsel %vm606, %v602, 0.0
        %v609 = vsel %vm607, %v600, 0.0
        %v610 = vsel %vm606, %v603, 0.0
        %v611 = vsel %vm607, %v601, 0.0
        %612 = vset.pattern.permute.xlu0 2
        %613 = vperm.xlu0 %612, %v503
        %v614 = vpop.permute.xlu0 %613
        %616 = vset.pattern.permute.xlu0 2
        %617 = vperm.xlu0 %616, %v504
        %v618 = vpop.permute.xlu0 %617
        %v620 = vmul.f32 %v608, %v614
        %v621 = vmul.f32 %v609, %v614
        %v622 = vmul.f32 %v610, %v618
        %v623 = vmul.f32 %v611, %v618
        %v624 = vadd.f32 %v587, %v620
        %v625 = vadd.f32 %v588, %v621
        %v626 = vadd.f32 %v589, %v622
        %v627 = vadd.f32 %v590, %v623
        %628 = vrot.lane.b32.xlu0 %v492, 1
        %v629 = vpop.permute.xlu0 %628
        %630 = vrot.lane.b32.xlu0 %v494, 1
        %v631 = vpop.permute.xlu0 %630
        %632 = vrot.lane.b32.xlu0 %v493, 1
        %v633 = vpop.permute.xlu0 %632
        %634 = vrot.lane.b32.xlu0 %v495, 1
        %v635 = vpop.permute.xlu0 %634
        %vm636 = vcmp.lt.s32.totalorder %v497, 1
        %v637 = vsel %vm636, %v629, %v633
        %v638 = vsel %vm636, %v631, %v635
        %v639 = vsel %vm636, %v633, %v629
        %v640 = vsel %vm636, %v635, %v631
        %v641 = vsel %vm534, %v639, 0.0
        %v642 = vsel %vm535, %v637, 0.0
        %v643 = vsel %vm534, %v640, 0.0
        %v644 = vsel %vm535, %v638, 0.0
        %645 = vset.pattern.permute.xlu0 3
        %646 = vperm.xlu0 %645, %v503
        %v647 = vpop.permute.xlu0 %646
        %649 = vset.pattern.permute.xlu0 3
        %650 = vperm.xlu0 %649, %v504
        %v651 = vpop.permute.xlu0 %650
        %v653 = vmul.f32 %v641, %v647
        %v654 = vmul.f32 %v642, %v647
        %v655 = vmul.f32 %v643, %v651
        %v656 = vmul.f32 %v644, %v651
        %v657 = vadd.f32 %v624, %v653
        %v658 = vadd.f32 %v625, %v654
        %v659 = vadd.f32 %v626, %v655
        %v660 = vadd.f32 %v627, %v656
        %661 = vrot.lane.b32.xlu0 %v492, 127
        %v662 = vpop.permute.xlu0 %661
        %663 = vrot.lane.b32.xlu0 %v494, 127
        %v664 = vpop.permute.xlu0 %663
        %665 = vrot.lane.b32.xlu0 %v493, 127
        %v666 = vpop.permute.xlu0 %665
        %667 = vrot.lane.b32.xlu0 %v495, 127
        %v668 = vpop.permute.xlu0 %667
        %vm669 = vcmp.lt.s32.totalorder %v497, 127
        %v670 = vsel %vm669, %v662, %v666
        %v671 = vsel %vm669, %v664, %v668
        %v672 = vsel %vm669, %v666, %v662
        %v673 = vsel %vm669, %v668, %v664
        %v674 = vsel %vm604, %v670, 0.0
        %v675 = vsel %vm605, %v672, 0.0
        %v676 = vsel %vm604, %v671, 0.0
        %v677 = vsel %vm605, %v673, 0.0
        %678 = vset.pattern.permute.xlu0 5
        %679 = vperm.xlu0 %678, %v503
        %v680 = vpop.permute.xlu0 %679
        %682 = vset.pattern.permute.xlu0 5
        %683 = vperm.xlu0 %682, %v504
        %v684 = vpop.permute.xlu0 %683
        %v686 = vmul.f32 %v674, %v680
        %v687 = vmul.f32 %v675, %v680
        %v688 = vmul.f32 %v676, %v684
        %v689 = vmul.f32 %v677, %v684
        %v690 = vadd.f32 %v657, %v686
        %v691 = vadd.f32 %v658, %v687
        %v692 = vadd.f32 %v659, %v688
        %v693 = vadd.f32 %v660, %v689
        %694 = vrot.lane.b32.xlu0 %v492, 113
        %v695 = vpop.permute.xlu0 %694
        %696 = vrot.lane.b32.xlu0 %v494, 113
        %v697 = vpop.permute.xlu0 %696
        %698 = vrot.lane.b32.xlu0 %v493, 113
        %v699 = vpop.permute.xlu0 %698
        %700 = vrot.lane.b32.xlu0 %v495, 113
        %v701 = vpop.permute.xlu0 %700
        %vm702 = vcmp.lt.s32.totalorder %v497, 113
        %v703 = vsel %vm702, %v695, %v699
        %v704 = vsel %vm702, %v697, %v701
        %v705 = vsel %vm702, %v699, %v695
        %v706 = vsel %vm702, %v701, %v697
        %vm707 = vcmp.lt.s32.totalorder %v501, 15
        %vm708 = vcmp.lt.s32.totalorder %v502, 15
        %vm709 = vmand %vm707, %vm534
        %vm710 = vmand %vm708, %vm535
        %v711 = vsel %vm709, %v703, 0.0
        %v712 = vsel %vm710, %v705, 0.0
        %v713 = vsel %vm709, %v704, 0.0
        %v714 = vsel %vm710, %v706, 0.0
        %715 = vset.pattern.permute.xlu0 6
        %716 = vperm.xlu0 %715, %v503
        %v717 = vpop.permute.xlu0 %716
        %719 = vset.pattern.permute.xlu0 6
        %720 = vperm.xlu0 %719, %v504
        %v721 = vpop.permute.xlu0 %720
        %v723 = vmul.f32 %v711, %v717
        %v724 = vmul.f32 %v712, %v717
        %v725 = vmul.f32 %v713, %v721
        %v726 = vmul.f32 %v714, %v721
        %v727 = vadd.f32 %v690, %v723
        %v728 = vadd.f32 %v691, %v724
        %v729 = vadd.f32 %v692, %v725
        %v730 = vadd.f32 %v693, %v726
        %731 = vrot.lane.b32.xlu0 %v492, 112
        %v732 = vpop.permute.xlu0 %731
        %733 = vrot.lane.b32.xlu0 %v494, 112
        %v734 = vpop.permute.xlu0 %733
        %735 = vrot.lane.b32.xlu0 %v493, 112
        %v736 = vpop.permute.xlu0 %735
        %737 = vrot.lane.b32.xlu0 %v495, 112
        %v738 = vpop.permute.xlu0 %737
        %vm739 = vcmp.lt.s32.totalorder %v497, 112
        %v740 = vsel %vm739, %v732, %v736
        %v741 = vsel %vm739, %v734, %v738
        %v742 = vsel %vm739, %v736, %v732
        %v743 = vsel %vm739, %v738, %v734
        %v744 = vsel %vm707, %v740, 0.0
        %v745 = vsel %vm708, %v742, 0.0
        %v746 = vsel %vm707, %v741, 0.0
        %v747 = vsel %vm708, %v743, 0.0
        %748 = vset.pattern.permute.xlu0 7
        %749 = vperm.xlu0 %748, %v503
        %v750 = vpop.permute.xlu0 %749
        %752 = vset.pattern.permute.xlu0 7
        %753 = vperm.xlu0 %752, %v504
        %v754 = vpop.permute.xlu0 %753
        %v756 = vmul.f32 %v744, %v750
        %v757 = vmul.f32 %v745, %v750
        %v758 = vmul.f32 %v746, %v754
        %v759 = vmul.f32 %v747, %v754
        %v760 = vadd.f32 %v727, %v756
        %v761 = vadd.f32 %v728, %v757
        %v762 = vadd.f32 %v729, %v758
        %v763 = vadd.f32 %v730, %v759
        %764 = vrot.lane.b32.xlu0 %v492, 111
        %v765 = vpop.permute.xlu0 %764
        %766 = vrot.lane.b32.xlu0 %v494, 111
        %v767 = vpop.permute.xlu0 %766
        %768 = vrot.lane.b32.xlu0 %v493, 111
        %v769 = vpop.permute.xlu0 %768
        %770 = vrot.lane.b32.xlu0 %v495, 111
        %v771 = vpop.permute.xlu0 %770
        %vm772 = vcmp.lt.s32.totalorder %v497, 111
        %v773 = vsel %vm772, %v765, %v769
        %v774 = vsel %vm772, %v767, %v771
        %v775 = vsel %vm772, %v769, %v765
        %v776 = vsel %vm772, %v771, %v767
        %vm777 = vmand %vm707, %vm604
        %vm778 = vmand %vm708, %vm605
        %v779 = vsel %vm777, %v773, 0.0
        %v780 = vsel %vm778, %v775, 0.0
        %v781 = vsel %vm777, %v774, 0.0
        %v782 = vsel %vm778, %v776, 0.0
        %783 = vset.pattern.permute.xlu0 8
        %784 = vperm.xlu0 %783, %v503
        %v785 = vpop.permute.xlu0 %784
        %787 = vset.pattern.permute.xlu0 8
        %788 = vperm.xlu0 %787, %v504
        %v789 = vpop.permute.xlu0 %788
        %v791 = vmul.f32 %v779, %v785
        %v792 = vmul.f32 %v780, %v785
        %v793 = vmul.f32 %v781, %v789
        %v794 = vmul.f32 %v782, %v789
        %v795 = vadd.f32 %v760, %v791
        %v796 = vadd.f32 %v761, %v792
        %v797 = vadd.f32 %v762, %v793
        %v798 = vadd.f32 %v763, %v794
        %v799 = vld [vmem:[%s5] sm:$0xff]
        %v800 = vld [vmem:[%s5 + $0x8] sm:$0xff]
        %802 = vset.pattern.permute.xlu0 0
        %803 = vperm.xlu0 %802, %v799
        %v804 = vpop.permute.xlu0 %803
        %807 = vset.pattern.permute.xlu0 0
        %808 = vperm.xlu0 %807, %v800
        %v809 = vpop.permute.xlu0 %808
        %v811 = vmul.f32 %v795, %v804
        %v812 = vmul.f32 %v796, %v804
        %v813 = vmul.f32 %v797, %v809
        %v814 = vmul.f32 %v798, %v809
        %v815 = vld [vmem:[%s6] sm:$0xff]
        %v816 = vld [vmem:[%s6 + $0x8] sm:$0xff]
        %818 = vset.pattern.permute.xlu0 0
        %819 = vperm.xlu0 %818, %v815
        %v820 = vpop.permute.xlu0 %819
        %823 = vset.pattern.permute.xlu0 0
        %824 = vperm.xlu0 %823, %v816
        %v825 = vpop.permute.xlu0 %824
        %v827 = vadd.f32 %v811, %v820
        %v828 = vadd.f32 %v812, %v820
        %v829 = vadd.f32 %v813, %v825
        %v830 = vadd.f32 %v814, %v825
        %vm831 = vcmp.gt.f32.partialorder %v827, 0.0
        %vm832 = vcmp.gt.f32.partialorder %v828, 0.0
        %vm833 = vcmp.gt.f32.partialorder %v829, 0.0
        %vm834 = vcmp.gt.f32.partialorder %v830, 0.0
        %v835 = vmin.f32 %v827, 0.0
        %v836 = vmin.f32 %v828, 0.0
        %v837 = vmin.f32 %v829, 0.0
        %v838 = vmin.f32 %v830, 0.0
        %v839 = vmul.f32 %v835, 1.442695
        %v840 = vpow.pop %v839
        %v841 = vmul.f32 %v836, 1.442695
        %v842 = vpow.pop %v841
        %v843 = vmul.f32 %v837, 1.442695
        %v844 = vpow.pop %v843
        %v845 = vmul.f32 %v838, 1.442695
        %v846 = vpow.pop %v845
        %v847 = vsub.f32 %v840, 1.0
        %v848 = vsub.f32 %v842, 1.0
        %v849 = vsub.f32 %v844, 1.0
        %v850 = vsub.f32 %v846, 1.0
        %v851 = vsel %vm831, %v827, %v847
        %v852 = vsel %vm832, %v828, %v848
        %v853 = vsel %vm833, %v829, %v849
        %v854 = vsel %vm834, %v830, %v850
        %v855 = vld [vmem:[%s7] sm:$0xf]
        %v856 = vld [vmem:[%s7 + $0x4] sm:$0xf]
        %v857 = vld [vmem:[%s7 + $0x8] sm:$0xf]
        %v858 = vld [vmem:[%s7 + $0xc] sm:$0xf]
        %v859 = vpack.c.bf16 %v853, %v851
        %v860 = vpack.c.bf16 %v854, %v852
        %v865 = vunpack.c.l.b16 %v855
        %v866 = vunpack.c.l.b16 %v856
        %v867 = vunpack.c.l.b16 %v857
        %v868 = vunpack.c.l.b16 %v858
        %v869 = vpack.c.b16 %v866, %v865
        %v870 = vpack.c.b16 %v868, %v867
        %vm871 = vcmask 130048
        %v873 = vsel %vm871, %v869, 0
        %v876 = vsel %vm871, %v870, 0
        %878 = vmatprep.subr.bf16.mxu0 0
        %879 = vmatpush1.bf16.msra.mxu0 0
        %880 = vmatprep.subr.bf16.mxu0 0
        %881 = vmatpush1.bf16.msra.mxu0 0
        %882 = vmatprep.subr.bf16.mxu0 0
        %883 = vmatpush1.bf16.msra.mxu0 0
        %884 = vmatprep.subr.bf16.mxu0 0
        %885 = vmatpush1.bf16.msra.mxu0 0
        %886 = vmatprep.subr.bf16.mxu0 0
        %887 = vmatpush1.bf16.msra.mxu0 0
        %888 = vmatprep.subr.bf16.mxu0 0
        %889 = vmatpush1.bf16.msra.mxu0 0
        %890 = vmatprep.subr.bf16.mxu0 0
        %891 = vmatpush1.bf16.msra.mxu0 0
        %892 = vmatprep.subr.bf16.mxu0 %v860
        %893 = vmatpush1.bf16.msra.mxu0 %v859
        %894 = vmatprep.subr.bf16.mxu0 0
        %895 = vmatpush2.bf16.msra.mxu0 0
        %896 = vmatprep.subr.bf16.mxu0 0
        %897 = vmatpush2.bf16.msra.mxu0 0
        %898 = vmatprep.subr.bf16.mxu0 0
        %899 = vmatpush2.bf16.msra.mxu0 0
        %900 = vmatprep.subr.bf16.mxu0 0
        %901 = vmatpush2.bf16.msra.mxu0 0
        %902 = vmatprep.subr.bf16.mxu0 0
        %903 = vmatpush2.bf16.msra.mxu0 0
        %904 = vmatprep.subr.bf16.mxu0 0
        %905 = vmatpush2.bf16.msra.mxu0 0
        %906 = vmatprep.subr.bf16.mxu0 0
        %907 = vmatpush2.bf16.msra.mxu0 0
        %908 = vmatprep.subr.bf16.mxu0 0
        %909 = vmatpush2.bf16.msra.mxu0 0
        %910 = vmatprep.mubr.bf16.mxu0 0
        %911 = vmatmul.mubr.bf16.gmra.mxu0 %v873
        %v912 = vpop.f32.mrf.mxu0
        %v913 = vadd.f32 0.0, %v912
        %v914 = vpop.f32.mrf.mxu0
        %v915 = vadd.f32 0.0, %v914
        %v916 = vpop.f32.mrf.mxu0
        %v917 = vadd.f32 0.0, %v916
        %v918 = vpop.f32.mrf.mxu0
        %v919 = vadd.f32 0.0, %v918
        %920 = vmatprep.mubr.bf16.mxu0 0
        %921 = vmatmul.mubr.bf16.gmra.mxu0 %v876
        %v922 = vpop.f32.mrf.mxu0
        %v923 = vadd.f32 0.0, %v922
        %v924 = vpop.f32.mrf.mxu0
        %v925 = vadd.f32 0.0, %v924
        %v926 = vpop.f32.mrf.mxu0
        %v927 = vadd.f32 0.0, %v926
        %v928 = vpop.f32.mrf.mxu0
        %v929 = vadd.f32 0.0, %v928
        %930 = vdwg.mxu0
        %v931 = vld [vmem:[%s8] sm:$0xff]
        %v932 = vld [vmem:[%s8 + $0x8] sm:$0xff]
        %v933 = vld [vmem:[%s8 + $0x10] sm:$0xff]
        %v934 = vld [vmem:[%s8 + $0x18] sm:$0xff]
        %936 = vset.pattern.permute.xlu0 0
        %937 = vperm.xlu0 %936, %v931
        %v938 = vpop.permute.xlu0 %937
        %941 = vset.pattern.permute.xlu0 0
        %942 = vperm.xlu0 %941, %v932
        %v943 = vpop.permute.xlu0 %942
        %946 = vset.pattern.permute.xlu0 0
        %947 = vperm.xlu0 %946, %v933
        %v948 = vpop.permute.xlu0 %947
        %951 = vset.pattern.permute.xlu0 0
        %952 = vperm.xlu0 %951, %v934
        %v953 = vpop.permute.xlu0 %952
        %v955 = vmul.f32 %v913, %v938
        %v956 = vmul.f32 %v915, %v938
        %v957 = vmul.f32 %v917, %v943
        %v958 = vmul.f32 %v919, %v943
        %v959 = vmul.f32 %v923, %v948
        %v960 = vmul.f32 %v925, %v948
        %v961 = vmul.f32 %v927, %v953
        %v962 = vmul.f32 %v929, %v953
        %v963 = vld [vmem:[%s9] sm:$0xff]
        %v964 = vld [vmem:[%s9 + $0x8] sm:$0xff]
        %v965 = vld [vmem:[%s9 + $0x10] sm:$0xff]
        %v966 = vld [vmem:[%s9 + $0x18] sm:$0xff]
        %968 = vset.pattern.permute.xlu0 0
        %969 = vperm.xlu0 %968, %v963
        %v970 = vpop.permute.xlu0 %969
        %973 = vset.pattern.permute.xlu0 0
        %974 = vperm.xlu0 %973, %v964
        %v975 = vpop.permute.xlu0 %974
        %978 = vset.pattern.permute.xlu0 0
        %979 = vperm.xlu0 %978, %v965
        %v980 = vpop.permute.xlu0 %979
        %983 = vset.pattern.permute.xlu0 0
        %984 = vperm.xlu0 %983, %v966
        %v985 = vpop.permute.xlu0 %984
        %v987 = vadd.f32 %v955, %v970
        %v988 = vadd.f32 %v956, %v970
        %v989 = vadd.f32 %v957, %v975
        %v990 = vadd.f32 %v958, %v975
        %v991 = vadd.f32 %v959, %v980
        %v992 = vadd.f32 %v960, %v980
        %v993 = vadd.f32 %v961, %v985
        %v994 = vadd.f32 %v962, %v985
        %v995 = vadd.f32 %v987, %v374
        %v996 = vadd.f32 %v988, %v375
        %v997 = vadd.f32 %v989, %v376
        %v998 = vadd.f32 %v990, %v377
        %v999 = vadd.f32 %v991, %v378
        %v1000 = vadd.f32 %v992, %v379
        %v1001 = vadd.f32 %v993, %v380
        %v1002 = vadd.f32 %v994, %v381
        %vm1003 = vcmp.gt.f32.partialorder %v995, 0.0
        %vm1004 = vcmp.gt.f32.partialorder %v996, 0.0
        %vm1005 = vcmp.gt.f32.partialorder %v997, 0.0
        %vm1006 = vcmp.gt.f32.partialorder %v998, 0.0
        %vm1007 = vcmp.gt.f32.partialorder %v999, 0.0
        %vm1008 = vcmp.gt.f32.partialorder %v1000, 0.0
        %vm1009 = vcmp.gt.f32.partialorder %v1001, 0.0
        %vm1010 = vcmp.gt.f32.partialorder %v1002, 0.0
        %v1011 = vmin.f32 %v995, 0.0
        %v1012 = vmin.f32 %v996, 0.0
        %v1013 = vmin.f32 %v997, 0.0
        %v1014 = vmin.f32 %v998, 0.0
        %v1015 = vmin.f32 %v999, 0.0
        %v1016 = vmin.f32 %v1000, 0.0
        %v1017 = vmin.f32 %v1001, 0.0
        %v1018 = vmin.f32 %v1002, 0.0
        %v1019 = vmul.f32 %v1011, 1.442695
        %v1020 = vpow.pop %v1019
        %v1021 = vmul.f32 %v1012, 1.442695
        %v1022 = vpow.pop %v1021
        %v1023 = vmul.f32 %v1013, 1.442695
        %v1024 = vpow.pop %v1023
        %v1025 = vmul.f32 %v1014, 1.442695
        %v1026 = vpow.pop %v1025
        %v1027 = vmul.f32 %v1015, 1.442695
        %v1028 = vpow.pop %v1027
        %v1029 = vmul.f32 %v1016, 1.442695
        %v1030 = vpow.pop %v1029
        %v1031 = vmul.f32 %v1017, 1.442695
        %v1032 = vpow.pop %v1031
        %v1033 = vmul.f32 %v1018, 1.442695
        %v1034 = vpow.pop %v1033
        %v1035 = vsub.f32 %v1020, 1.0
        %v1036 = vsub.f32 %v1022, 1.0
        %v1037 = vsub.f32 %v1024, 1.0
        %v1038 = vsub.f32 %v1026, 1.0
        %v1039 = vsub.f32 %v1028, 1.0
        %v1040 = vsub.f32 %v1030, 1.0
        %v1041 = vsub.f32 %v1032, 1.0
        %v1042 = vsub.f32 %v1034, 1.0
        %v1043 = vsel %vm1003, %v995, %v1035
        %v1044 = vsel %vm1004, %v996, %v1036
        %v1045 = vsel %vm1005, %v997, %v1037
        %v1046 = vsel %vm1006, %v998, %v1038
        %v1047 = vsel %vm1007, %v999, %v1039
        %v1048 = vsel %vm1008, %v1000, %v1040
        %v1049 = vsel %vm1009, %v1001, %v1041
        %v1050 = vsel %vm1010, %v1002, %v1042
        %1051 = vst [vmem:[%s367] sm:$0xff] %v1043
        %1052 = vst [vmem:[%s367 + $0x8] sm:$0xff] %v1044
        %1053 = vst [vmem:[%s367 + $0x10] sm:$0xff] %v1045
        %1054 = vst [vmem:[%s367 + $0x18] sm:$0xff] %v1046
        %1055 = vst [vmem:[%s367 + $0x20] sm:$0xff] %v1047
        %1056 = vst [vmem:[%s367 + $0x28] sm:$0xff] %v1048
        %1057 = vst [vmem:[%s367 + $0x30] sm:$0xff] %v1049
        %1058 = vst [vmem:[%s367 + $0x38] sm:$0xff] %v1050
        %s1059 = sand.u32 %s248, 1
        %s1060 = scalar_lea.sflag [#allocation4], %s1059
        %s1061 = sand.u32 %s248, 1
        %s1062 = smul.addr %s1061, 64
        %s1063 = scalar_lea.vmem [#allocation5], %s1062
        // Predicated region
        $region65: #{tpu_custom_call.1} parent=59 // pred_check
          %p1064 = pneg %p258
        $region66: #{tpu_custom_call.1} parent=59 // pred_check_branch
          %1066 = sbr.rel (%p1064) target = $region68
        $region67: #{tpu_custom_call.1} parent=59 // pred_region
          %s1068 = ssub.s32 1024, 1024
          %1069 = vsyncadd %s1060, %s1068
          %s1070 = smul.addr %s25, 8
          %s1071 = smul.addr %s1070, 128
          %s1072 = scalar_lea.hbm %s10, %s1071
          %s1073 = sshll.u32 %s1063, 4
          %s1074 = int_to_ptr.vmem [resolvable:$true] %s1073
          %1079 = dma.vmem_to_hbm [thread:$0]  %s1074, 1024, %s1072, %s1060, 256, 256, 16
        $region68: #{tpu_custom_call.1} parent=59 // pred_fallthru
          _
      $region60: #{tpu_custom_call.1} parent=5 // pred_fallthru
        _
      %p1080 = scmp.le.s32.totalorder 2, %s20
      // Predicated region
      $region69: #{tpu_custom_call.1} parent=5 // pred_check
        %p1081 = pneg %p1080
      $region70: #{tpu_custom_call.1} parent=5 // pred_check_branch
        %1083 = sbr.rel (%p1081) target = $region72
      $region71: #{tpu_custom_call.1} parent=5 // pred_region
        %s1084 = ssub.s32 %s20, 2
        // Predicated region
        $region73: #{tpu_custom_call.1} parent=71 // pred_check
          %p1085 = pneg %p264
        $region74: #{tpu_custom_call.1} parent=71 // pred_check_branch
          %1087 = sbr.rel (%p1085) target = $region76
        $region75: #{tpu_custom_call.1} parent=71 // pred_region
          %s1088 = sand.u32 %s249, 1
          %s1089 = scalar_lea.sflag [#allocation4], %s1088
          %s1090 = sand.u32 %s249, 1
          %s1091 = smul.addr %s1090, 64
          %s1092 = scalar_lea.vmem [#allocation5], %s1091
          %1093 = dma.done %s1089, 1024
        $region76: #{tpu_custom_call.1} parent=71 // pred_fallthru
          _
      $region72: #{tpu_custom_call.1} parent=5 // pred_fallthru
        _
    $region6: #{tpu_custom_call.1} parent=1 // loop_footer
      %s24 = sadd.s32 1, %s20
    $region7: #{tpu_custom_call.1} parent=1 // loop_footer_branch
      %19 = sbr.rel target = $region3
    $region8: #{tpu_custom_call.1} parent=1 // loop_exit
      _
    %1094 = vsyncpa [#allocation3], 1
    %s1095 = scalar_lea.sflag [#allocation3], 1
    %1096 = vsyncpa %s1095, 1
    %1097 = vsyncpa [#allocation4], 1
    %s1098 = scalar_lea.sflag [#allocation4], 1
    %1099 = vsyncpa %s1098, 1

</llo_original>
